<compile_context>
chip_gen: v7x
topology: tpu7x:2x2x1
jax: 0.10.0
libtpu: 0.0.40
codegen_flags: <defaults>
</compile_context>

<pallas_src>
import jax
import jax.numpy as jnp
from jax.experimental import pallas as pl
from jax.experimental.pallas import tpu as pltpu

LANE = 128


def _round_up(n: int, m: int) -> int:
    return ((n + m - 1) // m) * m


# ---------------------------------------------------------------------------
# Kernel: one (batch-tile, hidden-tile) step of y = relu(x @ W1 + b1) @ W2 + b2
# ---------------------------------------------------------------------------
def mlp_kernel(x_ref, w1_ref, b1_ref, w2_ref, b2_ref, o_ref, acc_ref):
    h_idx = pl.program_id(1)

    @pl.when(h_idx == 0)
    def _init():
        acc_ref[...] = jnp.zeros_like(acc_ref)

    w1 = w1_ref[...]
    w2 = w2_ref[...]
    x = x_ref[...].astype(w1.dtype)                        # cast operand only
    h = jnp.dot(x, w1, preferred_element_type=jnp.float32)
    h = jnp.maximum(h + b1_ref[...], 0.0)                  # bias + ReLU in f32
    acc_ref[...] += jnp.dot(h.astype(w2.dtype), w2,
                            preferred_element_type=jnp.float32)

    @pl.when(h_idx == pl.num_programs(1) - 1)
    def _finalize():
        o_ref[...] = (acc_ref[...] + b2_ref[...]).astype(o_ref.dtype)


# ---------------------------------------------------------------------------
# Tiling heuristics (VMEM-budgeted; budget kept well under v7x's 64 MiB/TC)
# ---------------------------------------------------------------------------
def _choose_tile_b(B, per_row_bytes, act_budget, max_tile_b):
    cands = [t for t in (512, 256, 128, 64, 32, 16, 8) if t <= max_tile_b]
    # Prefer >= 2 grid steps so the "parallel" batch axis can use both v7x TCs.
    preferred = [t for t in cands if 2 * t <= B] or cands
    for t in preferred:
        B_p = _round_up(B, t)
        if t * per_row_bytes > act_budget:
            continue
        if (B_p - B) / B_p > 0.10 and t > 8:   # cap batch-padding waste
            continue
        return t
    return 8


def _choose_tile_h(hiden_p, indim_p, outdim_p, tile_b, w_bytes, budget):
    def need(th, bufs):
        return (bufs * (indim_p + outdim_p) * w_bytes * th   # W1 & W2 slices
                + tile_b * th * (4 + w_bytes)                 # f32 h + cast copy
                + bufs * th * 4)                              # b1 slice
    if need(hiden_p, 1) <= budget:
        return hiden_p                                        # fully resident
    n = hiden_p // LANE
    best = LANE
    for d in range(1, n + 1):                                 # divisors -> exact tiling
        if n % d:
            continue
        th = d * LANE
        if need(th, 2) <= budget:
            best = th
    return best


# ---------------------------------------------------------------------------
# Parameter preparation (hoisted out of the per-call path; do this ONCE)
# ---------------------------------------------------------------------------
def prepare_params(w1, b1, w2, b2, *, param_dtype=None):
    """Pad feature dims to multiples of 128 and (optionally) cast to bf16.

    Weights use (in_features, out_features) layout (transposed vs. PyTorch).
    bf16 weights with f32 accumulation are a good default on v5e/v6e/v7x.
    """
    indim, hiden = w1.shape
    outdim = w2.shape[1]
    w_dtype = param_dtype if param_dtype is not None else w1.dtype
    indim_p, hiden_p, outdim_p = (_round_up(d, LANE)
                                  for d in (indim, hiden, outdim))
    w1_p = jnp.zeros((indim_p, hiden_p), w_dtype).at[:indim, :hiden].set(
        w1.astype(w_dtype))
    b1_p = jnp.zeros((1, hiden_p), jnp.float32).at[0, :hiden].set(
        b1.astype(jnp.float32))
    w2_p = jnp.zeros((hiden_p, outdim_p), w_dtype).at[:hiden, :outdim].set(
        w2.astype(w_dtype))
    b2_p = jnp.zeros((1, outdim_p), jnp.float32).at[0, :outdim].set(
        b2.astype(jnp.float32))
    return {"w1": w1_p, "b1": b1_p, "w2": w2_p, "b2": b2_p,
            "dims": (indim, hiden, outdim)}


# ---------------------------------------------------------------------------
# Forward pass
# ---------------------------------------------------------------------------
def mlp_forward_prepared(x, params, *, max_tile_b=512, tile_h=None,
                         vmem_budget_bytes=44 << 20):
    """y = relu(x @ W1 + b1) @ W2 + b2 using pre-padded params from prepare_params."""
    indim, hiden, outdim = params["dims"]
    w1_p, b1_p, w2_p, b2_p = params["w1"], params["b1"], params["w2"], params["b2"]
    indim_p, hiden_p = w1_p.shape
    outdim_p = w2_p.shape[1]

    B = x.shape[0]
    out_dtype = x.dtype
    w_bytes = jnp.dtype(w1_p.dtype).itemsize
    # Stage x in the (possibly narrower) weight dtype so the padded copy and the
    # kernel's reads move half the bytes when weights are bf16.
    stage_dtype = (w1_p.dtype
                   if w_bytes < jnp.dtype(x.dtype).itemsize else x.dtype)
    x_bytes = jnp.dtype(stage_dtype).itemsize

    # --- batch tile ---------------------------------------------------------
    per_row_bytes = (2 * indim_p * x_bytes            # double-buffered x tile
                     + 2 * outdim_p * jnp.dtype(out_dtype).itemsize  # out tile
                     + outdim_p * 4)                   # f32 accumulator
    tile_b = _choose_tile_b(B, per_row_bytes, vmem_budget_bytes // 2, max_tile_b)
    B_p = _round_up(B, tile_b)

    # --- hidden tile --------------------------------------------------------
    if tile_h is None:
        tile_h = _choose_tile_h(hiden_p, indim_p, outdim_p, tile_b, w_bytes,
                                vmem_budget_bytes - tile_b * per_row_bytes)
    assert hiden_p % tile_h == 0, "tile_h must divide the padded hidden dim"
    n_h = hiden_p // tile_h
    weights_resident = (n_h == 1)
    bufs_w = 1 if weights_resident else 2

    # --- stage x only if padding / dtype change is actually needed -----------
    if (B_p, indim_p) != x.shape or x.dtype != stage_dtype:
        x_in = jnp.zeros((B_p, indim_p), stage_dtype).at[:B, :indim].set(
            x.astype(stage_dtype))
    else:
        x_in = x

    # --- VMEM limit sized to the real footprint ------------------------------
    footprint = (tile_b * per_row_bytes
                 + bufs_w * (indim_p + outdim_p) * w_bytes * tile_h
                 + tile_b * tile_h * (4 + w_bytes)     # f32 h + cast copy
                 + bufs_w * tile_h * 4 + outdim_p * 4)  # biases
    vmem_limit = int(min(max(footprint * 5 // 4 + (4 << 20), 32 << 20), 60 << 20))

    cost = pl.CostEstimate(
        flops=2 * B_p * (indim_p * hiden_p + hiden_p * outdim_p),
        transcendentals=0,
        bytes_accessed=(B_p * indim_p * x_bytes
                        + (indim_p + outdim_p) * hiden_p * w_bytes
                        + B_p * outdim_p * jnp.dtype(out_dtype).itemsize))

    # Constant-index (resident) specs: single-buffered.  Streaming specs keep
    # default double buffering so their DMA overlaps compute.
    w_mode = pl.Buffered(1) if weights_resident else None

    out_p = pl.pallas_call(
        mlp_kernel,
        out_shape=jax.ShapeDtypeStruct((B_p, outdim_p), out_dtype),
        grid=(B_p // tile_b, n_h),
        in_specs=[
            pl.BlockSpec((tile_b, indim_p), lambda i, h: (i, 0)),
            pl.BlockSpec((indim_p, tile_h), lambda i, h: (0, h),
                         pipeline_mode=w_mode),
            pl.BlockSpec((1, tile_h), lambda i, h: (0, h),
                         pipeline_mode=w_mode),
            pl.BlockSpec((tile_h, outdim_p), lambda i, h: (h, 0),
                         pipeline_mode=w_mode),
            pl.BlockSpec((1, outdim_p), lambda i, h: (0, 0),
                         pipeline_mode=pl.Buffered(1)),
        ],
        out_specs=pl.BlockSpec((tile_b, outdim_p), lambda i, h: (i, 0)),
        scratch_shapes=[pltpu.VMEM((tile_b, outdim_p), jnp.float32)],
        compiler_params=pltpu.CompilerParams(
            dimension_semantics=("parallel", "arbitrary"),
            vmem_limit_bytes=vmem_limit),
        cost_estimate=cost,
    )(x_in, w1_p, b1_p, w2_p, b2_p)

    # Strip feature/batch padding.
    return out_p[:B, :outdim]


def mlp_forward(x, w1, b1, w2, b2, *, param_dtype=None, **kw):
    """Convenience wrapper (pads params per call; prefer prepare_params once)."""
    return mlp_forward_prepared(
        x, prepare_params(w1, b1, w2, b2, param_dtype=param_dtype), **kw)


def reference_forward(x, w1, b1, w2, b2):
    h = jnp.maximum(x @ w1 + b1, 0.0)
    return h @ w2 + b2


if __name__ == "__main__":
    # Small shapes consistent with the module config: indim=32, hiden=64, outdim=16.
    B, indim, hiden, outdim = 8, 32, 64, 16

    key = jax.random.PRNGKey(0)
    kx, kw1, kb1, kw2, kb2 = jax.random.split(key, 5)

    bound1 = 1.0 / (indim ** 0.5)
    bound2 = 1.0 / (hiden ** 0.5)
    x = jax.random.normal(kx, (B, indim), dtype=jnp.float32)
    w1 = jax.random.uniform(kw1, (indim, hiden), minval=-bound1, maxval=bound1,
                            dtype=jnp.float32)
    b1 = jax.random.uniform(kb1, (hiden,), minval=-bound1, maxval=bound1,
                            dtype=jnp.float32)
    w2 = jax.random.uniform(kw2, (hiden, outdim), minval=-bound2, maxval=bound2,
                            dtype=jnp.float32)
    b2 = jax.random.uniform(kb2, (outdim,), minval=-bound2, maxval=bound2,
                            dtype=jnp.float32)

    # Pad/cast params ONCE (hoisted out of the per-call path), then run.
    params = prepare_params(w1, b1, w2, b2)
    fwd = jax.jit(lambda xx: mlp_forward_prepared(xx, params))
    out = fwd(x)
    jax.block_until_ready(out)

    ref = reference_forward(x, w1, b1, w2, b2)
    assert out.shape == (B, outdim)
    assert jnp.allclose(out, ref, atol=1e-5, rtol=1e-5)

    # Exercise the hidden-tiled accumulator path (2 hidden grid steps) at small scale.
    hiden2 = 256
    kw1b, kb1b, kw2b, kb2b = jax.random.split(jax.random.PRNGKey(1), 4)
    bound1b = 1.0 / (indim ** 0.5)
    bound2b = 1.0 / (hiden2 ** 0.5)
    w1b = jax.random.uniform(kw1b, (indim, hiden2), minval=-bound1b, maxval=bound1b,
                             dtype=jnp.float32)
    b1b = jax.random.uniform(kb1b, (hiden2,), minval=-bound1b, maxval=bound1b,
                             dtype=jnp.float32)
    w2b = jax.random.uniform(kw2b, (hiden2, outdim), minval=-bound2b, maxval=bound2b,
                             dtype=jnp.float32)
    b2b = jax.random.uniform(kb2b, (outdim,), minval=-bound2b, maxval=bound2b,
                             dtype=jnp.float32)
    params2 = prepare_params(w1b, b1b, w2b, b2b)
    out2 = mlp_forward_prepared(x, params2, tile_h=128)   # forces n_h = 2
    jax.block_until_ready(out2)
    ref2 = reference_forward(x, w1b, b1b, w2b, b2b)
    assert jnp.allclose(out2, ref2, atol=1e-5, rtol=1e-5)

    print("KERNEL_OK")
</pallas_src>

<mosaic_0001>
module attributes {stable_mosaic.version = 11 : i64} {
  func.func @mlp_kernel(%arg0: i32, %arg1: i32, %arg2: memref<8x128xf32, #tpu.memory_space<vmem>>, %arg3: memref<128x128xf32, #tpu.memory_space<vmem>>, %arg4: memref<1x128xf32, #tpu.memory_space<vmem>>, %arg5: memref<128x128xf32, #tpu.memory_space<vmem>>, %arg6: memref<1x128xf32, #tpu.memory_space<vmem>>, %arg7: memref<8x128xf32, #tpu.memory_space<vmem>>, %arg8: memref<8x128xf32, #tpu.memory_space<vmem>>) attributes {dimension_semantics = [#tpu.dimension_semantics<parallel>, #tpu.dimension_semantics<arbitrary>], iteration_bounds = array<i64: 1, 1>, scalar_prefetch = 0 : i64, scratch_operands = 1 : i64, tpu.core_type = #tpu.core_type<tc>, window_params = [{transform_indices = @transform_0, window_bounds = array<i64: 8, 128>}, {pipeline_mode = #tpu.pipeline_mode<synchronous>, transform_indices = @transform_1, window_bounds = array<i64: 128, 128>}, {pipeline_mode = #tpu.pipeline_mode<synchronous>, transform_indices = @transform_2, window_bounds = array<i64: 1, 128>}, {pipeline_mode = #tpu.pipeline_mode<synchronous>, transform_indices = @transform_3, window_bounds = array<i64: 128, 128>}, {pipeline_mode = #tpu.pipeline_mode<synchronous>, transform_indices = @transform_4, window_bounds = array<i64: 1, 128>}, {transform_indices = @transform_5, window_bounds = array<i64: 8, 128>}]} {
    %c0_i32 = arith.constant 0 : i32
    %0 = arith.cmpi eq, %arg1, %c0_i32 : i32
    %1 = arith.extui %0 : i1 to i32
    %c0_i32_0 = arith.constant 0 : i32
    %2 = arith.cmpi ne, %1, %c0_i32_0 : i32
    scf.if %2 {
      %cst_16 = arith.constant 0.000000e+00 : f32
      %19 = vector.broadcast %cst_16 : f32 to vector<8x128xf32>
      %c0_17 = arith.constant 0 : index
      %c0_18 = arith.constant 0 : index
      %20 = vector.load %arg8[%c0_17, %c0_18] : memref<8x128xf32, #tpu.memory_space<vmem>>, vector<8x128xf32>
      tpu.vector_store %arg8[%c0_17, %c0_18], %19 {strides = array<i32>} : memref<8x128xf32, #tpu.memory_space<vmem>>, vector<8x128xf32>,
    } else {
    }
    %c0 = arith.constant 0 : index
    %c0_1 = arith.constant 0 : index
    %3 = vector.load %arg3[%c0, %c0_1] : memref<128x128xf32, #tpu.memory_space<vmem>>, vector<128x128xf32>
    %c0_2 = arith.constant 0 : index
    %c0_3 = arith.constant 0 : index
    %4 = vector.load %arg5[%c0_2, %c0_3] : memref<128x128xf32, #tpu.memory_space<vmem>>, vector<128x128xf32>
    %c0_4 = arith.constant 0 : index
    %c0_5 = arith.constant 0 : index
    %5 = vector.load %arg2[%c0_4, %c0_5] : memref<8x128xf32, #tpu.memory_space<vmem>>, vector<8x128xf32>
    %cst = arith.constant dense<0.000000e+00> : vector<8x128xf32>
    %6 = tpu.matmul %5, %3, %cst {dimension_numbers = #tpu.dot_dimension_numbers<[1], [0], [0], [1], [0, 0, 1, 1], [], []>} : vector<8x128xf32>, vector<128x128xf32>, vector<8x128xf32> -> vector<8x128xf32>
    %c0_6 = arith.constant 0 : index
    %c0_7 = arith.constant 0 : index
    %7 = vector.load %arg4[%c0_6, %c0_7] : memref<1x128xf32, #tpu.memory_space<vmem>>, vector<1x128xf32>
    %8 = vector.broadcast %7 : vector<1x128xf32> to vector<8x128xf32>
    %9 = arith.addf %6, %8 : vector<8x128xf32>
    %cst_8 = arith.constant 0.000000e+00 : f32
    %10 = vector.broadcast %cst_8 : f32 to vector<8x128xf32>
    %11 = arith.maximumf %9, %10 : vector<8x128xf32>
    %c0_9 = arith.constant 0 : index
    %c0_10 = arith.constant 0 : index
    %12 = vector.load %arg8[%c0_9, %c0_10] : memref<8x128xf32, #tpu.memory_space<vmem>>, vector<8x128xf32>
    %cst_11 = arith.constant dense<0.000000e+00> : vector<8x128xf32>
    %13 = tpu.matmul %11, %4, %cst_11 {dimension_numbers = #tpu.dot_dimension_numbers<[1], [0], [0], [1], [0, 0, 1, 1], [], []>} : vector<8x128xf32>, vector<128x128xf32>, vector<8x128xf32> -> vector<8x128xf32>
    %14 = arith.addf %12, %13 : vector<8x128xf32>
    %c0_12 = arith.constant 0 : index
    %c0_13 = arith.constant 0 : index
    %15 = vector.load %arg8[%c0_12, %c0_13] : memref<8x128xf32, #tpu.memory_space<vmem>>, vector<8x128xf32>
    tpu.vector_store %arg8[%c0_12, %c0_13], %14 {strides = array<i32>} : memref<8x128xf32, #tpu.memory_space<vmem>>, vector<8x128xf32>,
    %c0_i32_14 = arith.constant 0 : i32
    %16 = arith.cmpi eq, %arg1, %c0_i32_14 : i32
    %17 = arith.extui %16 : i1 to i32
    %c0_i32_15 = arith.constant 0 : i32
    %18 = arith.cmpi ne, %17, %c0_i32_15 : i32
    scf.if %18 {
      %c0_16 = arith.constant 0 : index
      %c0_17 = arith.constant 0 : index
      %19 = vector.load %arg8[%c0_16, %c0_17] : memref<8x128xf32, #tpu.memory_space<vmem>>, vector<8x128xf32>
      %c0_18 = arith.constant 0 : index
      %c0_19 = arith.constant 0 : index
      %20 = vector.load %arg6[%c0_18, %c0_19] : memref<1x128xf32, #tpu.memory_space<vmem>>, vector<1x128xf32>
      %21 = vector.broadcast %20 : vector<1x128xf32> to vector<8x128xf32>
      %22 = arith.addf %19, %21 : vector<8x128xf32>
      %c0_20 = arith.constant 0 : index
      %c0_21 = arith.constant 0 : index
      %23 = vector.load %arg7[%c0_20, %c0_21] : memref<8x128xf32, #tpu.memory_space<vmem>>, vector<8x128xf32>
      tpu.vector_store %arg7[%c0_20, %c0_21], %22 {strides = array<i32>} : memref<8x128xf32, #tpu.memory_space<vmem>>, vector<8x128xf32>,
    } else {
    }
    return
  }
  func.func @transform_0(%arg0: i32, %arg1: i32) -> (i32, i32) {
    %c0_i32 = arith.constant 0 : i32
    %c0_i32_0 = arith.constant 0 : i32
    return %arg0, %c0_i32 : i32, i32
  }
  func.func @transform_1(%arg0: i32, %arg1: i32) -> (i32, i32) {
    %c0_i32 = arith.constant 0 : i32
    %c0_i32_0 = arith.constant 0 : i32
    return %c0_i32, %arg1 : i32, i32
  }
  func.func @transform_2(%arg0: i32, %arg1: i32) -> (i32, i32) {
    %c0_i32 = arith.constant 0 : i32
    %c0_i32_0 = arith.constant 0 : i32
    return %c0_i32, %arg1 : i32, i32
  }
  func.func @transform_3(%arg0: i32, %arg1: i32) -> (i32, i32) {
    %c0_i32 = arith.constant 0 : i32
    %c0_i32_0 = arith.constant 0 : i32
    return %arg1, %c0_i32 : i32, i32
  }
  func.func @transform_4(%arg0: i32, %arg1: i32) -> (i32, i32) {
    %c0_i32 = arith.constant 0 : i32
    %c0_i32_0 = arith.constant 0 : i32
    %c0_i32_1 = arith.constant 0 : i32
    return %c0_i32, %c0_i32_0 : i32, i32
  }
  func.func @transform_5(%arg0: i32, %arg1: i32) -> (i32, i32) {
    %c0_i32 = arith.constant 0 : i32
    %c0_i32_0 = arith.constant 0 : i32
    return %arg0, %c0_i32 : i32, i32
  }
}

</mosaic_0001>

<llo_original>
// kernel: _lambda_.1
$region0: #{_lambda_.1}
  #allocation0 [shape = 'u32[]', space=smem, size = 0x4, offset = 0x4, fixed_abs, tag = 'smem constant byte address 0x4 - core index']
  #allocation1 [shape = 'u32[144,128]{1,0:T(1,128)}', space=vmem, size = 0x12000, scoped, tag = 'internal scratch']
  #allocation2 [shape = 'f32[8,128]{1,0:T(8,128)}', space=vmem, size = 0x1000, scoped, tag = 'scratch operand']
  %s0 = inlined_call_operand.vmem [shape: f32[8,128], index: 0, kind: input, shape index: {}]
  %s1 = inlined_call_operand.hbm [shape: f32[128,128], index: 1, kind: input, shape index: {}]
  %s2 = inlined_call_operand.vmem [shape: f32[1,128], index: 2, kind: input, shape index: {}]
  %s3 = inlined_call_operand.hbm [shape: f32[128,128], index: 3, kind: input, shape index: {}]
  %s4 = inlined_call_operand.vmem [shape: f32[1,128], index: 4, kind: input, shape index: {}]
  %s5 = inlined_call_operand.hbm [shape: f32[8,128], index: 5, kind: output, shape index: {}]
  %s6 = sld [smem:[#allocation0]]
  $region46: #{_lambda_.1} parent=0
    _
  %s8 = ssub.s32 1, %s6
  %s9 = scalar_select 0, %s8, %s6
  $region1: #{_lambda_.1} parent=0
    #allocation3 [shape = 'u8[65536]{0}', space=vmem, size = 0x10000, scoped, tag = 'input window, operand 1, single buffered']
    #allocation4 [shape = 's32[1]{0}', space=sflag, size = 0x4, scoped, tag = 'scoped memory for _lambda_.1']
    #allocation5 [shape = 's32[1]{0}', space=sflag, size = 0x4, scoped, tag = 'scoped memory for _lambda_.1']
    #allocation6 [shape = 'u8[65536]{0}', space=vmem, size = 0x10000, scoped, tag = 'input window, operand 3, single buffered']
    #allocation7 [shape = 's32[1]{0}', space=sflag, size = 0x4, scoped, tag = 'scoped memory for _lambda_.1']
    #allocation8 [shape = 'u8[4096]{0}', space=vmem, size = 0x1000, scoped, tag = 'output window, operand 0, single buffered']
    %10 = vsyncpa [#allocation4], 0
    %11 = vsyncpa [#allocation7], 0
    %12 = vsyncpa [#allocation5], 0
    // Predicated region
    $region2: #{_lambda_.1} parent=1 // pred_check
      _
    $region3: #{_lambda_.1} parent=1 // pred_check_branch
      %14 = sbr.rel (0) target = $region5
    $region4: #{_lambda_.1} parent=1 // pred_region
      _
    $region5: #{_lambda_.1} parent=1 // pred_fallthru
      _
    // Predicated region
    $region6: #{_lambda_.1} parent=1 // pred_check
      _
    $region7: #{_lambda_.1} parent=1 // pred_check_branch
      %16 = sbr.rel (0) target = $region9
    $region8: #{_lambda_.1} parent=1 // pred_region
      %s18 = ssub.s32 2048, 2048
      %19 = vsyncadd [#allocation4], %s18
      %s20 = sshll.u32 [#allocation3], 4
      %s21 = int_to_ptr.vmem [resolvable:$true] %s20
      %26 = dma.hbm_to_vmem [thread:$0]  %s1, 2048, %s21, [#allocation4], 128, 128, 8
    $region9: #{_lambda_.1} parent=1 // pred_fallthru
      _
    // Predicated region
    $region10: #{_lambda_.1} parent=1 // pred_check
      _
    $region11: #{_lambda_.1} parent=1 // pred_check_branch
      %28 = sbr.rel (0) target = $region13
    $region12: #{_lambda_.1} parent=1 // pred_region
      _
    $region13: #{_lambda_.1} parent=1 // pred_fallthru
      _
    // Predicated region
    $region14: #{_lambda_.1} parent=1 // pred_check
      _
    $region15: #{_lambda_.1} parent=1 // pred_check_branch
      %30 = sbr.rel (0) target = $region17
    $region16: #{_lambda_.1} parent=1 // pred_region
      %s32 = ssub.s32 2048, 2048
      %33 = vsyncadd [#allocation7], %s32
      %s34 = sshll.u32 [#allocation6], 4
      %s35 = int_to_ptr.vmem [resolvable:$true] %s34
      %40 = dma.hbm_to_vmem [thread:$0]  %s3, 2048, %s35, [#allocation7], 128, 128, 8
    $region17: #{_lambda_.1} parent=1 // pred_fallthru
      _
    // Predicated region
    $region18: #{_lambda_.1} parent=1 // pred_check
      _
    $region19: #{_lambda_.1} parent=1 // pred_check_branch
      %42 = sbr.rel (0) target = $region21
    $region20: #{_lambda_.1} parent=1 // pred_region
      _
    $region21: #{_lambda_.1} parent=1 // pred_fallthru
      _
    // Predicated region
    $region22: #{_lambda_.1} parent=1 // pred_check
      _
    $region23: #{_lambda_.1} parent=1 // pred_check_branch
      %44 = sbr.rel (0) target = $region25
    $region24: #{_lambda_.1} parent=1 // pred_region
      %45 = dma.done [#allocation4], 2048
    $region25: #{_lambda_.1} parent=1 // pred_fallthru
      _
    // Predicated region
    $region26: #{_lambda_.1} parent=1 // pred_check
      _
    $region27: #{_lambda_.1} parent=1 // pred_check_branch
      %47 = sbr.rel (0) target = $region29
    $region28: #{_lambda_.1} parent=1 // pred_region
      %48 = dma.done [#allocation7], 2048
    $region29: #{_lambda_.1} parent=1 // pred_fallthru
      _
    %p49 = scmp.eq.s32.totalorder 0, 0
    // Predicated region
    $region30: #{_lambda_.1} parent=1 // pred_check
      %p50 = pneg %p49
    $region31: #{_lambda_.1} parent=1 // pred_check_branch
      %52 = sbr.rel (%p50) target = $region33
    $region32: #{_lambda_.1} parent=1 // pred_region
      %53 = vst [vmem:[#allocation2] sm:$0xff] 0.0
    $region33: #{_lambda_.1} parent=1 // pred_fallthru
      _
    %v54 = vld [vmem:[#allocation3] sm:$0xff]
    %v55 = vld [vmem:[#allocation3 + $0x8] sm:$0xff]
    %v56 = vld [vmem:[#allocation3 + $0x10] sm:$0xff]
    %v57 = vld [vmem:[#allocation3 + $0x18] sm:$0xff]
    %v58 = vld [vmem:[#allocation3 + $0x20] sm:$0xff]
    %v59 = vld [vmem:[#allocation3 + $0x28] sm:$0xff]
    %v60 = vld [vmem:[#allocation3 + $0x30] sm:$0xff]
    %v61 = vld [vmem:[#allocation3 + $0x38] sm:$0xff]
    %v62 = vld [vmem:[#allocation3 + $0x40] sm:$0xff]
    %v63 = vld [vmem:[#allocation3 + $0x48] sm:$0xff]
    %v64 = vld [vmem:[#allocation3 + $0x50] sm:$0xff]
    %v65 = vld [vmem:[#allocation3 + $0x58] sm:$0xff]
    %v66 = vld [vmem:[#allocation3 + $0x60] sm:$0xff]
    %v67 = vld [vmem:[#allocation3 + $0x68] sm:$0xff]
    %v68 = vld [vmem:[#allocation3 + $0x70] sm:$0xff]
    %v69 = vld [vmem:[#allocation3 + $0x78] sm:$0xff]
    %v70 = vld [vmem:[#allocation6] sm:$0xff]
    %v71 = vld [vmem:[#allocation6 + $0x8] sm:$0xff]
    %v72 = vld [vmem:[#allocation6 + $0x10] sm:$0xff]
    %v73 = vld [vmem:[#allocation6 + $0x18] sm:$0xff]
    %v74 = vld [vmem:[#allocation6 + $0x20] sm:$0xff]
    %v75 = vld [vmem:[#allocation6 + $0x28] sm:$0xff]
    %v76 = vld [vmem:[#allocation6 + $0x30] sm:$0xff]
    %v77 = vld [vmem:[#allocation6 + $0x38] sm:$0xff]
    %v78 = vld [vmem:[#allocation6 + $0x40] sm:$0xff]
    %v79 = vld [vmem:[#allocation6 + $0x48] sm:$0xff]
    %v80 = vld [vmem:[#allocation6 + $0x50] sm:$0xff]
    %v81 = vld [vmem:[#allocation6 + $0x58] sm:$0xff]
    %v82 = vld [vmem:[#allocation6 + $0x60] sm:$0xff]
    %v83 = vld [vmem:[#allocation6 + $0x68] sm:$0xff]
    %v84 = vld [vmem:[#allocation6 + $0x70] sm:$0xff]
    %v85 = vld [vmem:[#allocation6 + $0x78] sm:$0xff]
    %v86 = vld [vmem:[%s0] sm:$0xff]
    %v87 = vld [vmem:[%s2] sm:$0x1]
    %v89 = vlaneseq
    %v90 = vshrl.u32 %v89, 7
    %v91 = vsub.s32 0, %v90
    %v92 = vrot.slane %v87, %v91
    %94 = vmatprep.subr.mxu0 0.0
    %95 = vmatpush1.msra.mxu0 %v54
    %96 = vmatprep.subr.mxu0 0.0
    %97 = vmatpush1.msra.mxu0 %v55
    %98 = vmatprep.subr.mxu0 0.0
    %99 = vmatpush1.msra.mxu0 %v56
    %100 = vmatprep.subr.mxu0 0.0
    %101 = vmatpush1.msra.mxu0 %v57
    %102 = vmatprep.subr.mxu0 0.0
    %103 = vmatpush1.msra.mxu0 %v58
    %104 = vmatprep.subr.mxu0 0.0
    %105 = vmatpush1.msra.mxu0 %v59
    %106 = vmatprep.subr.mxu0 0.0
    %107 = vmatpush1.msra.mxu0 %v60
    %108 = vmatprep.subr.mxu0 0.0
    %109 = vmatpush1.msra.mxu0 %v61
    %110 = vmatprep.subr.mxu0 0.0
    %111 = vmatpush1.msra.mxu0 %v62
    %112 = vmatprep.subr.mxu0 0.0
    %113 = vmatpush1.msra.mxu0 %v63
    %114 = vmatprep.subr.mxu0 0.0
    %115 = vmatpush1.msra.mxu0 %v64
    %116 = vmatprep.subr.mxu0 0.0
    %117 = vmatpush1.msra.mxu0 %v65
    %118 = vmatprep.subr.mxu0 0.0
    %119 = vmatpush1.msra.mxu0 %v66
    %120 = vmatprep.subr.mxu0 0.0
    %121 = vmatpush1.msra.mxu0 %v67
    %122 = vmatprep.subr.mxu0 0.0
    %123 = vmatpush1.msra.mxu0 %v68
    %124 = vmatprep.subr.mxu0 0.0
    %125 = vmatpush1.msra.mxu0 %v69
    %126 = vmatprep.subr.mxu0 0.0
    %127 = vmatpush1.msra.mxu0 0.0
    %128 = vmatprep.subr.mxu0 0.0
    %129 = vmatpush1.msra.mxu0 0.0
    %130 = vmatprep.subr.mxu0 0.0
    %131 = vmatpush1.msra.mxu0 0.0
    %132 = vmatprep.subr.mxu0 0.0
    %133 = vmatpush1.msra.mxu0 0.0
    %134 = vmatprep.subr.mxu0 0.0
    %135 = vmatpush1.msra.mxu0 0.0
    %136 = vmatprep.subr.mxu0 0.0
    %137 = vmatpush1.msra.mxu0 0.0
    %138 = vmatprep.subr.mxu0 0.0
    %139 = vmatpush1.msra.mxu0 0.0
    %140 = vmatprep.subr.mxu0 0.0
    %141 = vmatpush1.msra.mxu0 0.0
    %142 = vmatprep.subr.mxu0 0.0
    %143 = vmatpush1.msra.mxu0 0.0
    %144 = vmatprep.subr.mxu0 0.0
    %145 = vmatpush1.msra.mxu0 0.0
    %146 = vmatprep.subr.mxu0 0.0
    %147 = vmatpush1.msra.mxu0 0.0
    %148 = vmatprep.subr.mxu0 0.0
    %149 = vmatpush1.msra.mxu0 0.0
    %150 = vmatprep.subr.mxu0 0.0
    %151 = vmatpush1.msra.mxu0 0.0
    %152 = vmatprep.subr.mxu0 0.0
    %153 = vmatpush1.msra.mxu0 0.0
    %154 = vmatprep.subr.mxu0 0.0
    %155 = vmatpush1.msra.mxu0 0.0
    %156 = vmatprep.subr.mxu0 0.0
    %157 = vmatpush1.msra.mxu0 0.0
    %158 = vmatprep.mubr.f32.mxu0 0.0
    %159 = vmatmul.mubr.f32.gmra.mrb[0].mxu0 %v86
    %v160 = vpop.f32.mrb[0].mxu0
    %v161 = vadd.f32 %v92, %v160
    %v162 = vpop.f32.mrb[0].mxu0
    %163 = vdwg.mxu0
    %v164 = vmax.f32 %v161, 0.0
    %v165 = vld [vmem:[#allocation2] sm:$0xff]
    %166 = vmatprep.subr.mxu0 0.0
    %167 = vmatpush1.msra.mxu0 %v70
    %168 = vmatprep.subr.mxu0 0.0
    %169 = vmatpush1.msra.mxu0 %v71
    %170 = vmatprep.subr.mxu0 0.0
    %171 = vmatpush1.msra.mxu0 %v72
    %172 = vmatprep.subr.mxu0 0.0
    %173 = vmatpush1.msra.mxu0 %v73
    %174 = vmatprep.subr.mxu0 0.0
    %175 = vmatpush1.msra.mxu0 %v74
    %176 = vmatprep.subr.mxu0 0.0
    %177 = vmatpush1.msra.mxu0 %v75
    %178 = vmatprep.subr.mxu0 0.0
    %179 = vmatpush1.msra.mxu0 %v76
    %180 = vmatprep.subr.mxu0 0.0
    %181 = vmatpush1.msra.mxu0 %v77
    %182 = vmatprep.subr.mxu0 0.0
    %183 = vmatpush1.msra.mxu0 %v78
    %184 = vmatprep.subr.mxu0 0.0
    %185 = vmatpush1.msra.mxu0 %v79
    %186 = vmatprep.subr.mxu0 0.0
    %187 = vmatpush1.msra.mxu0 %v80
    %188 = vmatprep.subr.mxu0 0.0
    %189 = vmatpush1.msra.mxu0 %v81
    %190 = vmatprep.subr.mxu0 0.0
    %191 = vmatpush1.msra.mxu0 %v82
    %192 = vmatprep.subr.mxu0 0.0
    %193 = vmatpush1.msra.mxu0 %v83
    %194 = vmatprep.subr.mxu0 0.0
    %195 = vmatpush1.msra.mxu0 %v84
    %196 = vmatprep.subr.mxu0 0.0
    %197 = vmatpush1.msra.mxu0 %v85
    %198 = vmatprep.subr.mxu0 0.0
    %199 = vmatpush1.msra.mxu0 0.0
    %200 = vmatprep.subr.mxu0 0.0
    %201 = vmatpush1.msra.mxu0 0.0
    %202 = vmatprep.subr.mxu0 0.0
    %203 = vmatpush1.msra.mxu0 0.0
    %204 = vmatprep.subr.mxu0 0.0
    %205 = vmatpush1.msra.mxu0 0.0
    %206 = vmatprep.subr.mxu0 0.0
    %207 = vmatpush1.msra.mxu0 0.0
    %208 = vmatprep.subr.mxu0 0.0
    %209 = vmatpush1.msra.mxu0 0.0
    %210 = vmatprep.subr.mxu0 0.0
    %211 = vmatpush1.msra.mxu0 0.0
    %212 = vmatprep.subr.mxu0 0.0
    %213 = vmatpush1.msra.mxu0 0.0
    %214 = vmatprep.subr.mxu0 0.0
    %215 = vmatpush1.msra.mxu0 0.0
    %216 = vmatprep.subr.mxu0 0.0
    %217 = vmatpush1.msra.mxu0 0.0
    %218 = vmatprep.subr.mxu0 0.0
    %219 = vmatpush1.msra.mxu0 0.0
    %220 = vmatprep.subr.mxu0 0.0
    %221 = vmatpush1.msra.mxu0 0.0
    %222 = vmatprep.subr.mxu0 0.0
    %223 = vmatpush1.msra.mxu0 0.0
    %224 = vmatprep.subr.mxu0 0.0
    %225 = vmatpush1.msra.mxu0 0.0
    %226 = vmatprep.subr.mxu0 0.0
    %227 = vmatpush1.msra.mxu0 0.0
    %228 = vmatprep.subr.mxu0 0.0
    %229 = vmatpush1.msra.mxu0 0.0
    %230 = vmatprep.mubr.f32.mxu0 0.0
    %231 = vmatmul.mubr.f32.gmra.mrb[0].mxu0 %v164
    %v232 = vpop.f32.mrb[0].mxu0
    %v233 = vadd.f32 0.0, %v232
    %v234 = vpop.f32.mrb[0].mxu0
    %235 = vdwg.mxu0
    %v236 = vadd.f32 %v165, %v233
    %237 = vst [vmem:[#allocation2] sm:$0xff] %v236
    // Predicated region
    $region34: #{_lambda_.1} parent=1 // pred_check
      %p238 = pneg %p49
    $region35: #{_lambda_.1} parent=1 // pred_check_branch
      %240 = sbr.rel (%p238) target = $region37
    $region36: #{_lambda_.1} parent=1 // pred_region
      %v241 = vld [vmem:[#allocation2] sm:$0xff]
      %v242 = vld [vmem:[%s4] sm:$0x1]
      %v244 = vlaneseq
      %v245 = vshrl.u32 %v244, 7
      %v246 = vsub.s32 0, %v245
      %v247 = vrot.slane %v242, %v246
      %v249 = vadd.f32 %v241, %v247
      %250 = vst [vmem:[#allocation8] sm:$0xff] %v249
    $region37: #{_lambda_.1} parent=1 // pred_fallthru
      _
    // Predicated region
    $region38: #{_lambda_.1} parent=1 // pred_check
      _
    $region39: #{_lambda_.1} parent=1 // pred_check_branch
      %252 = sbr.rel (0) target = $region41
    $region40: #{_lambda_.1} parent=1 // pred_region
      %s254 = ssub.s32 128, 128
      %255 = vsyncadd [#allocation5], %s254
      %s257 = sshll.u32 [#allocation8], 4
      %s258 = int_to_ptr.vmem [resolvable:$true] %s257
      %260 = dma.vmem_to_hbm [thread:$0]  %s258, 128, %s5, [#allocation5]
    $region41: #{_lambda_.1} parent=1 // pred_fallthru
      _
    // Predicated region
    $region42: #{_lambda_.1} parent=1 // pred_check
      _
    $region43: #{_lambda_.1} parent=1 // pred_check_branch
      %262 = sbr.rel (0) target = $region45
    $region44: #{_lambda_.1} parent=1 // pred_region
      %263 = dma.done [#allocation5], 128
    $region45: #{_lambda_.1} parent=1 // pred_fallthru
      _
    %264 = vsyncpa [#allocation4], 1
    %265 = vsyncpa [#allocation7], 1
    %266 = vsyncpa [#allocation5], 1

</llo_original>
